<compile_context>
chip_gen: v7x
topology: tpu7x:2x2x1
jax: 0.10.0
libtpu: 0.0.40
codegen_flags: <defaults>
</compile_context>

<pallas_src>
import jax
import jax.numpy as jnp
from jax.experimental import pallas as pl
from jax.experimental.pallas import tpu as pltpu


def attention_kernel(inp_ref, src_ref, w_io_ref, w_oc_ref,
                     out_ref, attn_ref,
                     x_sc, xo_sc, m_sc, l_sc, ctx_sc):
    s_idx = pl.program_id(1)
    n_s = pl.num_programs(1)
    ts = src_ref.shape[0]                  # S tile size (static)
    d = x_sc.shape[-1]                     # output_embed_dim (static)

    # --- init for a new batch row: one fused MXU call gives both input
    #     projections; reset the online-softmax running stats.
    @pl.when(s_idx == 0)
    def _init():
        proj = jnp.dot(inp_ref[...], w_io_ref[...],
                       preferred_element_type=jnp.float32)      # (1, 2D)
        x_sc[...] = proj[:, :d]            # inp @ W_in
        xo_sc[...] = proj[:, d:]           # inp @ W_out_inp
        m_sc[...] = jnp.full_like(m_sc, -jnp.inf)
        l_sc[...] = jnp.zeros_like(l_sc)
        ctx_sc[...] = jnp.zeros_like(ctx_sc)

    src = src_ref[...]                                          # (ts, D)

    # scores[k] = <x, src[k]>  -> lane-dense (1, ts) row (MXU).
    scores = jnp.dot(x_sc[...], src.T,
                     preferred_element_type=jnp.float32)        # (1, ts)

    # Stash raw scores in the attention output row itself (resident across s;
    # its index_map is constant in s), replacing the old scores scratch.
    start = pl.multiple_of(s_idx * ts, ts)
    attn_ref[:, pl.ds(start, ts)] = scores

    # --- online softmax update + context accumulation.
    m_prev = m_sc[...]
    m_new = jnp.maximum(m_prev, jnp.max(scores, axis=-1, keepdims=True))
    alpha = jnp.exp(m_prev - m_new)
    p = jnp.exp(scores - m_new)                                 # (1, ts)
    l_sc[...] = alpha * l_sc[...] + jnp.sum(p, axis=-1, keepdims=True)
    ctx_sc[...] = alpha * ctx_sc[...] + jnp.dot(
        p, src, preferred_element_type=jnp.float32)             # (1, D)
    m_sc[...] = m_new

    # --- finalize: normalize (exact reciprocal; epilogue runs once per row),
    #     emit attention map and the tanh output projection.
    @pl.when(s_idx == n_s - 1)
    def _fin():
        inv_l = 1.0 / l_sc[...]
        attn_ref[...] = jnp.exp(attn_ref[...] - m_sc[...]) * inv_l
        ctx = ctx_sc[...] * inv_l                               # (1, D)
        out_ref[...] = jnp.tanh(
            jnp.dot(ctx, w_oc_ref[...], preferred_element_type=jnp.float32)
            + xo_sc[...])


def attention_layer(inp, source_hids, w_in, w_out, *, ts=None):
    """inp: (B, E_in); source_hids: (S, B, D); w_in: (E_in, D);
    w_out: (D + E_in, D)  (weights stored pre-transposed for right-mult).

    Tiling notes (per generation): per-step src DMA is ts*D*4 bytes, double
    buffered; with the default ts=min(S,1024) and D=128 that is ~1 MiB of VMEM,
    comfortably inside v5e's 16 MiB default scoped limit and v7x's 64 MiB
    physical VMEM.  The batch axis is 'parallel' so v7x shards rows across its
    two TensorCores (B >= 2 required to use both)."""
    B, e_in = inp.shape
    S, B2, D = source_hids.shape
    assert B2 == B
    assert D + e_in == w_out.shape[0]
    if ts is None:
        ts = min(S, 1024)
    # TODO(synk): if S needs padding to a tile multiple, padded keys must be
    # masked to -inf before the exp (not handled here; we assert instead).
    assert S % ts == 0 and ts % 128 == 0, "S must be a multiple of ts (>=128)"
    assert D % 128 == 0, "D must be a lane multiple for the (S, B*D) view"

    # Fused [W_in | W_out_input-half] -> one prologue matmul; ctx half separate.
    w_in_out = jnp.concatenate([w_in, w_out[D:]], axis=1)       # (E_in, 2D)
    w_out_ctx = w_out[:D]                                       # (D, D)

    # FREE reshape (trailing-dims merge = bitcast, no HBM traffic): the (ts, D)
    # block at block index (s, b) is source_hids[s*ts:(s+1)*ts, b, :].
    src2d = source_hids.reshape(S, B * D)
    # Give per-row tensors a size-1 middle dim so per-row blocks keep the last
    # two block dims fully-covering (no sub-(8,128) block shapes anywhere).
    inp3 = inp.reshape(B, 1, e_in)

    out3, attn3 = pl.pallas_call(
        attention_kernel,
        out_shape=(jax.ShapeDtypeStruct((B, 1, D), jnp.float32),
                   jax.ShapeDtypeStruct((B, 1, S), jnp.float32)),
        grid_spec=pltpu.PrefetchScalarGridSpec(
            num_scalar_prefetch=0,
            grid=(B, S // ts),
            in_specs=[
                pl.BlockSpec((None, 1, e_in), lambda b, s: (b, 0, 0)),  # input row
                pl.BlockSpec((ts, D), lambda b, s: (s, b)),             # src tile
                pl.BlockSpec((e_in, 2 * D), lambda b, s: (0, 0)),       # [W_in|W_out_inp]
                pl.BlockSpec((D, D), lambda b, s: (0, 0)),              # W_out_ctx
            ],
            out_specs=[
                pl.BlockSpec((None, 1, D), lambda b, s: (b, 0, 0)),     # out row
                pl.BlockSpec((None, 1, S), lambda b, s: (b, 0, 0)),     # attn row (B,S)
            ],
            scratch_shapes=[
                pltpu.VMEM((1, D), jnp.float32),   # x = inp @ W_in
                pltpu.VMEM((1, D), jnp.float32),   # inp @ W_out_inp
                pltpu.VMEM((1, 1), jnp.float32),   # running max m
                pltpu.VMEM((1, 1), jnp.float32),   # running sum l
                pltpu.VMEM((1, D), jnp.float32),   # ctx accumulator
            ]),
        compiler_params=pltpu.CompilerParams(
            dimension_semantics=("parallel", "arbitrary"),
            vmem_limit_bytes=32 * 1024 * 1024),
    )(inp3, src2d, w_in_out, w_out_ctx)

    out = out3.reshape(B, D)
    # Module returns attention as (S, B); this transpose touches only B*S*4
    # bytes (negligible next to the S*B*D src stream).
    attn = attn3.reshape(B, S).T
    return out, attn


def attention_layer_ref(inp, src, w_in, w_out):
    x = inp @ w_in
    scores = jnp.sum(src * x[None], axis=2)
    attn = jax.nn.softmax(scores, axis=0)
    ctx = jnp.sum(attn[:, :, None] * src, axis=0)
    out = jnp.tanh(jnp.concatenate([ctx, inp], axis=1) @ w_out)
    return out, attn


if __name__ == "__main__":
    # Small but tiling-exercising shapes: grid = (8 batch rows, 2 S tiles).
    B, S = 8, 512
    E_IN = 128        # input_embed_dim
    D = 128           # output_embed_dim (module requires E_IN == D for concat)

    key = jax.random.PRNGKey(0)
    k_inp, k_src, k_win, k_wout = jax.random.split(key, 4)

    inp = jax.random.normal(k_inp, (B, E_IN), dtype=jnp.float32)
    src = jax.random.normal(k_src, (S, B, D), dtype=jnp.float32)

    # Linear init in the module: uniform(-0.1, 0.1), no bias.
    # Stored as (in_features, out_features) so the kernel right-multiplies.
    w_in = jax.random.uniform(k_win, (E_IN, D), dtype=jnp.float32,
                              minval=-0.1, maxval=0.1)
    w_out = jax.random.uniform(k_wout, (D + E_IN, D), dtype=jnp.float32,
                               minval=-0.1, maxval=0.1)

    out, attn = attention_layer(inp, src, w_in, w_out, ts=256)
    jax.block_until_ready((out, attn))

    out_ref, attn_ref_val = attention_layer_ref(inp, src, w_in, w_out)
    assert out.shape == (B, D) and attn.shape == (S, B)
    # Tolerance budget: f32 MXU accumulation-order differences only (exact
    # reciprocal now used in the finalize).
    assert jnp.allclose(out, out_ref, atol=2e-3, rtol=2e-3)
    assert jnp.allclose(attn, attn_ref_val, atol=2e-3, rtol=2e-3)

    print("KERNEL_OK")
</pallas_src>

<mosaic_0001>
module attributes {stable_mosaic.version = 11 : i64} {
  func.func @attention_kernel(%arg0: i32, %arg1: i32, %arg2: memref<1x1x128xf32, #tpu.memory_space<vmem>>, %arg3: memref<256x128xf32, #tpu.memory_space<vmem>>, %arg4: memref<128x256xf32, #tpu.memory_space<vmem>>, %arg5: memref<128x128xf32, #tpu.memory_space<vmem>>, %arg6: memref<1x1x128xf32, #tpu.memory_space<vmem>>, %arg7: memref<1x1x512xf32, #tpu.memory_space<vmem>>, %arg8: memref<1x128xf32, #tpu.memory_space<vmem>>, %arg9: memref<1x128xf32, #tpu.memory_space<vmem>>, %arg10: memref<1x1xf32, #tpu.memory_space<vmem>>, %arg11: memref<1x1xf32, #tpu.memory_space<vmem>>, %arg12: memref<1x128xf32, #tpu.memory_space<vmem>>) attributes {dimension_semantics = [#tpu.dimension_semantics<parallel>, #tpu.dimension_semantics<arbitrary>], iteration_bounds = array<i64: 8, 2>, scalar_prefetch = 0 : i64, scratch_operands = 5 : i64, tpu.core_type = #tpu.core_type<tc>, window_params = [{transform_indices = @transform_0, window_bounds = array<i64: 1, 1, 128>}, {transform_indices = @transform_1, window_bounds = array<i64: 256, 128>}, {pipeline_mode = #tpu.pipeline_mode<synchronous>, transform_indices = @transform_2, window_bounds = array<i64: 128, 256>}, {pipeline_mode = #tpu.pipeline_mode<synchronous>, transform_indices = @transform_3, window_bounds = array<i64: 128, 128>}, {transform_indices = @transform_4, window_bounds = array<i64: 1, 1, 128>}, {transform_indices = @transform_5, window_bounds = array<i64: 1, 1, 512>}]} {
    %c0_i32 = arith.constant 0 : i32
    %0 = arith.cmpi eq, %arg1, %c0_i32 : i32
    %1 = arith.extui %0 : i1 to i32
    %c0_i32_0 = arith.constant 0 : i32
    %2 = arith.cmpi ne, %1, %c0_i32_0 : i32
    scf.if %2 {
      %c0_22 = arith.constant 0 : index
      %c0_23 = arith.constant 0 : index
      %c0_24 = arith.constant 0 : index
      %38 = vector.load %arg2[%c0_22, %c0_23, %c0_24] : memref<1x1x128xf32, #tpu.memory_space<vmem>>, vector<1x1x128xf32>
      %39 = vector.shape_cast %38 : vector<1x1x128xf32> to vector<1x128xf32>
      %c0_25 = arith.constant 0 : index
      %c0_26 = arith.constant 0 : index
      %40 = vector.load %arg4[%c0_25, %c0_26] : memref<128x256xf32, #tpu.memory_space<vmem>>, vector<128x256xf32>
      %cst_27 = arith.constant dense<0.000000e+00> : vector<1x256xf32>
      %41 = tpu.matmul %39, %40, %cst_27 {dimension_numbers = #tpu.dot_dimension_numbers<[1], [0], [0], [1], [0, 0, 1, 1], [], []>} : vector<1x128xf32>, vector<128x256xf32>, vector<1x256xf32> -> vector<1x256xf32>
      %42 = vector.extract_strided_slice %41 {offsets = [0, 0], sizes = [1, 128], strides = [1, 1]} : vector<1x256xf32> to vector<1x128xf32>
      %c0_28 = arith.constant 0 : index
      %c0_29 = arith.constant 0 : index
      %43 = vector.load %arg8[%c0_28, %c0_29] : memref<1x128xf32, #tpu.memory_space<vmem>>, vector<1x128xf32>
      tpu.vector_store %arg8[%c0_28, %c0_29], %42 {strides = array<i32>} : memref<1x128xf32, #tpu.memory_space<vmem>>, vector<1x128xf32>,
      %44 = vector.extract_strided_slice %41 {offsets = [0, 128], sizes = [1, 128], strides = [1, 1]} : vector<1x256xf32> to vector<1x128xf32>
      %c0_30 = arith.constant 0 : index
      %c0_31 = arith.constant 0 : index
      %45 = vector.load %arg9[%c0_30, %c0_31] : memref<1x128xf32, #tpu.memory_space<vmem>>, vector<1x128xf32>
      tpu.vector_store %arg9[%c0_30, %c0_31], %44 {strides = array<i32>} : memref<1x128xf32, #tpu.memory_space<vmem>>, vector<1x128xf32>,
      %cst_32 = arith.constant 0xFF800000 : f32
      %46 = vector.broadcast %cst_32 : f32 to vector<1x1xf32>
      %c0_33 = arith.constant 0 : index
      %c0_34 = arith.constant 0 : index
      %47 = vector.load %arg10[%c0_33, %c0_34] : memref<1x1xf32, #tpu.memory_space<vmem>>, vector<1x1xf32>
      tpu.vector_store %arg10[%c0_33, %c0_34], %46 {strides = array<i32>} : memref<1x1xf32, #tpu.memory_space<vmem>>, vector<1x1xf32>,
      %cst_35 = arith.constant 0.000000e+00 : f32
      %48 = vector.broadcast %cst_35 : f32 to vector<1x1xf32>
      %c0_36 = arith.constant 0 : index
      %c0_37 = arith.constant 0 : index
      %49 = vector.load %arg11[%c0_36, %c0_37] : memref<1x1xf32, #tpu.memory_space<vmem>>, vector<1x1xf32>
      tpu.vector_store %arg11[%c0_36, %c0_37], %48 {strides = array<i32>} : memref<1x1xf32, #tpu.memory_space<vmem>>, vector<1x1xf32>,
      %cst_38 = arith.constant 0.000000e+00 : f32
      %50 = vector.broadcast %cst_38 : f32 to vector<1x128xf32>
      %c0_39 = arith.constant 0 : index
      %c0_40 = arith.constant 0 : index
      %51 = vector.load %arg12[%c0_39, %c0_40] : memref<1x128xf32, #tpu.memory_space<vmem>>, vector<1x128xf32>
      tpu.vector_store %arg12[%c0_39, %c0_40], %50 {strides = array<i32>} : memref<1x128xf32, #tpu.memory_space<vmem>>, vector<1x128xf32>,
    } else {
    }
    %c0 = arith.constant 0 : index
    %c0_1 = arith.constant 0 : index
    %3 = vector.load %arg3[%c0, %c0_1] : memref<256x128xf32, #tpu.memory_space<vmem>>, vector<256x128xf32>
    %c0_2 = arith.constant 0 : index
    %c0_3 = arith.constant 0 : index
    %4 = vector.load %arg8[%c0_2, %c0_3] : memref<1x128xf32, #tpu.memory_space<vmem>>, vector<1x128xf32>
    %5 = tpu.transpose %3, [1, 0] : vector<256x128xf32> -> vector<128x256xf32>
    %cst = arith.constant dense<0.000000e+00> : vector<1x256xf32>
    %6 = tpu.matmul %4, %5, %cst {dimension_numbers = #tpu.dot_dimension_numbers<[1], [0], [0], [1], [0, 0, 1, 1], [], []>} : vector<1x128xf32>, vector<128x256xf32>, vector<1x256xf32> -> vector<1x256xf32>
    %c256_i32 = arith.constant 256 : i32
    %7 = arith.muli %arg1, %c256_i32 : i32
    %8 = tpu.assume_multiple %7, 256 : i32
    %c0_4 = arith.constant 0 : index
    %c0_5 = arith.constant 0 : index
    %9 = arith.index_cast %8 : i32 to index
    %10 = vector.load %arg7[%c0_4, %c0_5, %9] : memref<1x1x512xf32, #tpu.memory_space<vmem>>, vector<1x1x256xf32>
    %11 = vector.shape_cast %10 : vector<1x1x256xf32> to vector<1x256xf32>
    %12 = vector.shape_cast %6 : vector<1x256xf32> to vector<1x1x256xf32>
    tpu.vector_store %arg7[%c0_4, %c0_5, %9], %12 {strides = array<i32>} : memref<1x1x512xf32, #tpu.memory_space<vmem>>, vector<1x1x256xf32>,
    %c0_6 = arith.constant 0 : index
    %c0_7 = arith.constant 0 : index
    %13 = vector.load %arg10[%c0_6, %c0_7] : memref<1x1xf32, #tpu.memory_space<vmem>>, vector<1x1xf32>
    %cst_8 = arith.constant dense<0xFF800000> : vector<1xf32>
    %14 = vector.multi_reduction <maximumf>, %6, %cst_8 [1] : vector<1x256xf32> to vector<1xf32>
    %15 = vector.shape_cast %14 : vector<1xf32> to vector<1x1xf32>
    %16 = arith.maximumf %13, %15 : vector<1x1xf32>
    %17 = arith.subf %13, %16 : vector<1x1xf32>
    %18 = math.exp %17 : vector<1x1xf32>
    %19 = vector.broadcast %16 : vector<1x1xf32> to vector<1x256xf32>
    %20 = arith.subf %6, %19 : vector<1x256xf32>
    %21 = math.exp %20 : vector<1x256xf32>
    %c0_9 = arith.constant 0 : index
    %c0_10 = arith.constant 0 : index
    %22 = vector.load %arg11[%c0_9, %c0_10] : memref<1x1xf32, #tpu.memory_space<vmem>>, vector<1x1xf32>
    %23 = arith.mulf %18, %22 : vector<1x1xf32>
    %cst_11 = arith.constant dense<0.000000e+00> : vector<1xf32>
    %24 = vector.multi_reduction <add>, %21, %cst_11 [1] : vector<1x256xf32> to vector<1xf32>
    %25 = vector.shape_cast %24 : vector<1xf32> to vector<1x1xf32>
    %26 = arith.addf %23, %25 : vector<1x1xf32>
    %c0_12 = arith.constant 0 : index
    %c0_13 = arith.constant 0 : index
    %27 = vector.load %arg11[%c0_12, %c0_13] : memref<1x1xf32, #tpu.memory_space<vmem>>, vector<1x1xf32>
    tpu.vector_store %arg11[%c0_12, %c0_13], %26 {strides = array<i32>} : memref<1x1xf32, #tpu.memory_space<vmem>>, vector<1x1xf32>,
    %c0_14 = arith.constant 0 : index
    %c0_15 = arith.constant 0 : index
    %28 = vector.load %arg12[%c0_14, %c0_15] : memref<1x128xf32, #tpu.memory_space<vmem>>, vector<1x128xf32>
    %29 = vector.broadcast %18 : vector<1x1xf32> to vector<1x128xf32>
    %30 = arith.mulf %29, %28 : vector<1x128xf32>
    %cst_16 = arith.constant dense<0.000000e+00> : vector<1x128xf32>
    %31 = tpu.matmul %21, %3, %cst_16 {dimension_numbers = #tpu.dot_dimension_numbers<[1], [0], [0], [1], [0, 0, 1, 1], [], []>} : vector<1x256xf32>, vector<256x128xf32>, vector<1x128xf32> -> vector<1x128xf32>
    %32 = arith.addf %30, %31 : vector<1x128xf32>
    %c0_17 = arith.constant 0 : index
    %c0_18 = arith.constant 0 : index
    %33 = vector.load %arg12[%c0_17, %c0_18] : memref<1x128xf32, #tpu.memory_space<vmem>>, vector<1x128xf32>
    tpu.vector_store %arg12[%c0_17, %c0_18], %32 {strides = array<i32>} : memref<1x128xf32, #tpu.memory_space<vmem>>, vector<1x128xf32>,
    %c0_19 = arith.constant 0 : index
    %c0_20 = arith.constant 0 : index
    %34 = vector.load %arg10[%c0_19, %c0_20] : memref<1x1xf32, #tpu.memory_space<vmem>>, vector<1x1xf32>
    tpu.vector_store %arg10[%c0_19, %c0_20], %16 {strides = array<i32>} : memref<1x1xf32, #tpu.memory_space<vmem>>, vector<1x1xf32>,
    %c1_i32 = arith.constant 1 : i32
    %35 = arith.cmpi eq, %arg1, %c1_i32 : i32
    %36 = arith.extui %35 : i1 to i32
    %c0_i32_21 = arith.constant 0 : i32
    %37 = arith.cmpi ne, %36, %c0_i32_21 : i32
    scf.if %37 {
      %c0_22 = arith.constant 0 : index
      %c0_23 = arith.constant 0 : index
      %38 = vector.load %arg11[%c0_22, %c0_23] : memref<1x1xf32, #tpu.memory_space<vmem>>, vector<1x1xf32>
      %cst_24 = arith.constant 1.000000e+00 : f32
      %39 = vector.broadcast %cst_24 : f32 to vector<1x1xf32>
      %40 = arith.divf %39, %38 : vector<1x1xf32>
      %c0_25 = arith.constant 0 : index
      %c0_26 = arith.constant 0 : index
      %c0_27 = arith.constant 0 : index
      %41 = vector.load %arg7[%c0_25, %c0_26, %c0_27] : memref<1x1x512xf32, #tpu.memory_space<vmem>>, vector<1x1x512xf32>
      %42 = vector.shape_cast %41 : vector<1x1x512xf32> to vector<1x512xf32>
      %c0_28 = arith.constant 0 : index
      %c0_29 = arith.constant 0 : index
      %43 = vector.load %arg10[%c0_28, %c0_29] : memref<1x1xf32, #tpu.memory_space<vmem>>, vector<1x1xf32>
      %44 = vector.broadcast %43 : vector<1x1xf32> to vector<1x512xf32>
      %45 = arith.subf %42, %44 : vector<1x512xf32>
      %46 = math.exp %45 : vector<1x512xf32>
      %47 = vector.broadcast %40 : vector<1x1xf32> to vector<1x512xf32>
      %48 = arith.mulf %46, %47 : vector<1x512xf32>
      %c0_30 = arith.constant 0 : index
      %c0_31 = arith.constant 0 : index
      %c0_32 = arith.constant 0 : index
      %49 = vector.load %arg7[%c0_30, %c0_31, %c0_32] : memref<1x1x512xf32, #tpu.memory_space<vmem>>, vector<1x1x512xf32>
      %50 = vector.shape_cast %49 : vector<1x1x512xf32> to vector<1x512xf32>
      %51 = vector.shape_cast %48 : vector<1x512xf32> to vector<1x1x512xf32>
      tpu.vector_store %arg7[%c0_30, %c0_31, %c0_32], %51 {strides = array<i32>} : memref<1x1x512xf32, #tpu.memory_space<vmem>>, vector<1x1x512xf32>,
      %c0_33 = arith.constant 0 : index
      %c0_34 = arith.constant 0 : index
      %52 = vector.load %arg12[%c0_33, %c0_34] : memref<1x128xf32, #tpu.memory_space<vmem>>, vector<1x128xf32>
      %53 = vector.broadcast %40 : vector<1x1xf32> to vector<1x128xf32>
      %54 = arith.mulf %52, %53 : vector<1x128xf32>
      %c0_35 = arith.constant 0 : index
      %c0_36 = arith.constant 0 : index
      %55 = vector.load %arg5[%c0_35, %c0_36] : memref<128x128xf32, #tpu.memory_space<vmem>>, vector<128x128xf32>
      %cst_37 = arith.constant dense<0.000000e+00> : vector<1x128xf32>
      %56 = tpu.matmul %54, %55, %cst_37 {dimension_numbers = #tpu.dot_dimension_numbers<[1], [0], [0], [1], [0, 0, 1, 1], [], []>} : vector<1x128xf32>, vector<128x128xf32>, vector<1x128xf32> -> vector<1x128xf32>
      %c0_38 = arith.constant 0 : index
      %c0_39 = arith.constant 0 : index
      %57 = vector.load %arg9[%c0_38, %c0_39] : memref<1x128xf32, #tpu.memory_space<vmem>>, vector<1x128xf32>
      %58 = arith.addf %56, %57 : vector<1x128xf32>
      %59 = math.tanh %58 : vector<1x128xf32>
      %c0_40 = arith.constant 0 : index
      %c0_41 = arith.constant 0 : index
      %c0_42 = arith.constant 0 : index
      %60 = vector.load %arg6[%c0_40, %c0_41, %c0_42] : memref<1x1x128xf32, #tpu.memory_space<vmem>>, vector<1x1x128xf32>
      %61 = vector.shape_cast %60 : vector<1x1x128xf32> to vector<1x128xf32>
      %62 = vector.shape_cast %59 : vector<1x128xf32> to vector<1x1x128xf32>
      tpu.vector_store %arg6[%c0_40, %c0_41, %c0_42], %62 {strides = array<i32>} : memref<1x1x128xf32, #tpu.memory_space<vmem>>, vector<1x1x128xf32>,
    } else {
    }
    return
  }
  func.func @transform_0(%arg0: i32, %arg1: i32) -> (i32, i32, i32) {
    %c0_i32 = arith.constant 0 : i32
    %c0_i32_0 = arith.constant 0 : i32
    %c0_i32_1 = arith.constant 0 : i32
    return %arg0, %c0_i32, %c0_i32_0 : i32, i32, i32
  }
  func.func @transform_1(%arg0: i32, %arg1: i32) -> (i32, i32) {
    %c0_i32 = arith.constant 0 : i32
    return %arg1, %arg0 : i32, i32
  }
  func.func @transform_2(%arg0: i32, %arg1: i32) -> (i32, i32) {
    %c0_i32 = arith.constant 0 : i32
    %c0_i32_0 = arith.constant 0 : i32
    %c0_i32_1 = arith.constant 0 : i32
    return %c0_i32, %c0_i32_0 : i32, i32
  }
  func.func @transform_3(%arg0: i32, %arg1: i32) -> (i32, i32) {
    %c0_i32 = arith.constant 0 : i32
    %c0_i32_0 = arith.constant 0 : i32
    %c0_i32_1 = arith.constant 0 : i32
    return %c0_i32, %c0_i32_0 : i32, i32
  }
  func.func @transform_4(%arg0: i32, %arg1: i32) -> (i32, i32, i32) {
    %c0_i32 = arith.constant 0 : i32
    %c0_i32_0 = arith.constant 0 : i32
    %c0_i32_1 = arith.constant 0 : i32
    return %arg0, %c0_i32, %c0_i32_0 : i32, i32, i32
  }
  func.func @transform_5(%arg0: i32, %arg1: i32) -> (i32, i32, i32) {
    %c0_i32 = arith.constant 0 : i32
    %c0_i32_0 = arith.constant 0 : i32
    %c0_i32_1 = arith.constant 0 : i32
    return %arg0, %c0_i32, %c0_i32_0 : i32, i32, i32
  }
}

</mosaic_0001>

<llo_original>
// kernel: tpu_custom_call.1
$region0: #{tpu_custom_call.1}
  #allocation0 [shape = 'u32[]', space=smem, size = 0x4, offset = 0x4, fixed_abs, tag = 'smem constant byte address 0x4 - core index']
  #allocation1 [shape = 'u32[144,128]{1,0:T(1,128)}', space=vmem, size = 0x12000, scoped, tag = 'internal scratch']
  #allocation2 [shape = 'f32[1,128]{1,0:T(1,128)}', space=vmem, size = 0x200, scoped, tag = 'scratch operand']
  #allocation3 [shape = 'f32[1,128]{1,0:T(1,128)}', space=vmem, size = 0x200, scoped, tag = 'scratch operand']
  #allocation4 [shape = 'f32[1,1]{1,0:T(1,128)}', space=vmem, size = 0x200, scoped, tag = 'scratch operand']
  #allocation5 [shape = 'f32[1,1]{1,0:T(1,128)}', space=vmem, size = 0x200, scoped, tag = 'scratch operand']
  #allocation6 [shape = 'f32[1,128]{1,0:T(1,128)}', space=vmem, size = 0x200, scoped, tag = 'scratch operand']
  %s0 = inlined_call_operand.hbm [shape: f32[8,1,128], index: 0, kind: input, shape index: {}]
  %s1 = inlined_call_operand.hbm [shape: f32[512,1024], index: 1, kind: input, shape index: {}]
  %s2 = inlined_call_operand.hbm [shape: f32[128,256], index: 2, kind: input, shape index: {}]
  %s3 = inlined_call_operand.hbm [shape: f32[128,128], index: 3, kind: input, shape index: {}]
  %s4 = inlined_call_operand.hbm [shape: f32[8,1,128], index: 4, kind: output, shape index: {0}]
  %s5 = inlined_call_operand.hbm [shape: f32[8,1,512], index: 5, kind: output, shape index: {1}]
  %6 = xla_tuple %s4, %s5
  %s7 = sld [smem:[#allocation0]]
  $region81: #{tpu_custom_call.1} parent=0
    _
  %s9 = ssub.s32 1, %s7
  %s10 = scalar_select 0, %s9, %s7
  $region1: #{tpu_custom_call.1} parent=0
    #allocation7 [shape = 'u8[1024]{0}', space=vmem, size = 0x400, scoped, tag = 'input window, operand 0']
    #allocation8 [shape = 's32[2]{0}', space=sflag, size = 0x8, scoped, tag = 'scoped memory for tpu_custom_call.1']
    #allocation9 [shape = 's32[2]{0}', space=sflag, size = 0x8, scoped, tag = 'scoped memory for tpu_custom_call.1']
    #allocation10 [shape = 'u8[262144]{0}', space=vmem, size = 0x40000, scoped, tag = 'input window, operand 1']
    #allocation11 [shape = 's32[2]{0}', space=sflag, size = 0x8, scoped, tag = 'scoped memory for tpu_custom_call.1']
    #allocation12 [shape = 'u8[131072]{0}', space=vmem, size = 0x20000, scoped, tag = 'input window, operand 2, single buffered']
    #allocation13 [shape = 'u8[65536]{0}', space=vmem, size = 0x10000, scoped, tag = 'input window, operand 3, single buffered']
    #allocation14 [shape = 's32[1]{0}', space=sflag, size = 0x4, scoped, tag = 'scoped memory for tpu_custom_call.1']
    #allocation15 [shape = 'u8[1024]{0}', space=vmem, size = 0x400, scoped, tag = 'output window, operand 0']
    #allocation16 [shape = 'u8[4096]{0}', space=vmem, size = 0x1000, scoped, tag = 'output window, operand 1']
    #allocation17 [shape = 's32[2]{0}', space=sflag, size = 0x8, scoped, tag = 'scoped memory for tpu_custom_call.1']
    %11 = vsyncpa [#allocation8], 0
    %s12 = scalar_lea.sflag [#allocation8], 1
    %13 = vsyncpa %s12, 0
    %14 = vsyncpa [#allocation11], 0
    %s15 = scalar_lea.sflag [#allocation11], 1
    %16 = vsyncpa %s15, 0
    %17 = vsyncpa [#allocation14], 0
    %18 = vsyncpa [#allocation9], 0
    %s19 = scalar_lea.sflag [#allocation9], 1
    %20 = vsyncpa %s19, 0
    %21 = vsyncpa [#allocation17], 0
    %s22 = scalar_lea.sflag [#allocation17], 1
    %23 = vsyncpa %s22, 0
    loop: start=0, step=1, limit=18
    $region2: #{tpu_custom_call.1} parent=1 // loop_pre_header
      _
    $region3: #{tpu_custom_call.1} parent=1 // loop_header
      %s25 = sphi 0, %s29
      %p26 = scmp.ge.s32.totalorder %s25, 18
      %s32 = sphi 0, %s44
      %s33 = sphi 0, %s40
      %s34 = sphi 0, %s32
      %s35 = sphi 0, %s33
      %s36 = sphi 0, %s34
      %s37 = sphi 0, %s35
      %s47 = sphi 0, %s49
      %s50 = sphi 0, %s47
      %s51 = sphi 0, %s50
      %s67 = sphi 0, %s51
      %s75 = sphi 0, %s77
      %s78 = sphi 0, %s75
      %s79 = sphi 0, %s78
      %s95 = sphi 0, %s79
      %s99 = sphi 0, %s99
      %s101 = sphi 0, %s99
      %s102 = sphi 0, %s101
      %s116 = sphi 0, %s102
      %s120 = sphi 0, %s120
      %s122 = sphi 0, %s120
      %s123 = sphi 0, %s122
      %s137 = sphi 0, %s123
      %s143 = sphi 0, %s145
      %s146 = sphi 0, %s143
      %s147 = sphi 0, %s146
      %s163 = sphi 0, %s147
      %s169 = sphi 0, %s171
      %s172 = sphi 0, %s169
      %s173 = sphi 0, %s172
      %s189 = sphi 0, %s173
    $region4: #{tpu_custom_call.1} parent=1 // loop_header_branch
      %28 = sbr.rel (%p26) target = $region8
    $region5: #{tpu_custom_call.1} parent=1 // loop_body
      %s30 = ssub.s32 %s25, 1
      %s31 = ssub.s32 %s25, 2
      %s38 = sadd.s32 1, %s33
      %p39 = scmp.ge.s32.totalorder %s38, 2
      %s40 = scalar_select %p39, 0, %s38
      %s41 = sadd.s32 1, %s32
      %s42 = scalar_select %p39, %s41, %s32
      %p43 = scmp.ge.s32.totalorder %s42, 8
      %s44 = scalar_select %p43, 0, %s42
      %s45 = ssub.s32 %s32, %s44
      %p46 = scmp.eq.s32.totalorder %s45, 0
      %s48 = sadd.s32 %s47, 1
      %s49 = scalar_select %p46, %s47, %s48
      %p52 = pneg %p46
      %p53 = scmp.eq.s32.totalorder %s25, 15
      %p54 = por %p52, %p53
      %p55 = scmp.ne.s32.totalorder %s47, %s50
      %p56 = scmp.eq.s32.totalorder %s25, 0
      %p57 = por %p55, %p56
      %p58 = scmp.ne.s32.totalorder %s47, %s50
      %p59 = scmp.eq.s32.totalorder %s30, 15
      %p60 = por %p58, %p59
      %p61 = scmp.ne.s32.totalorder %s50, %s51
      %p62 = scmp.eq.s32.totalorder %s30, 0
      %p63 = por %p61, %p62
      %p64 = scmp.ne.s32.totalorder %s50, %s51
      %p65 = scmp.eq.s32.totalorder %s31, 15
      %p66 = por %p64, %p65
      %p68 = scmp.ne.s32.totalorder %s51, %s67
      %p69 = scmp.eq.s32.totalorder %s31, 0
      %p70 = por %p68, %p69
      %s71 = ssub.s32 %s33, %s40
      %s72 = ssub.s32 %s32, %s44
      %s73 = sor.u32 %s71, %s72
      %p74 = scmp.eq.s32.totalorder %s73, 0
      %s76 = sadd.s32 %s75, 1
      %s77 = scalar_select %p74, %s75, %s76
      %p80 = pneg %p74
      %p81 = scmp.eq.s32.totalorder %s25, 15
      %p82 = por %p80, %p81
      %p83 = scmp.ne.s32.totalorder %s75, %s78
      %p84 = scmp.eq.s32.totalorder %s25, 0
      %p85 = por %p83, %p84
      %p86 = scmp.ne.s32.totalorder %s75, %s78
      %p87 = scmp.eq.s32.totalorder %s30, 15
      %p88 = por %p86, %p87
      %p89 = scmp.ne.s32.totalorder %s78, %s79
      %p90 = scmp.eq.s32.totalorder %s30, 0
      %p91 = por %p89, %p90
      %p92 = scmp.ne.s32.totalorder %s78, %s79
      %p93 = scmp.eq.s32.totalorder %s31, 15
      %p94 = por %p92, %p93
      %p96 = scmp.ne.s32.totalorder %s79, %s95
      %p97 = scmp.eq.s32.totalorder %s31, 0
      %p98 = por %p96, %p97
      %s100 = sadd.s32 %s99, 1
      %p103 = scmp.eq.s32.totalorder %s25, 15
      %p104 = scmp.ne.s32.totalorder %s99, %s101
      %p105 = scmp.eq.s32.totalorder %s25, 0
      %p106 = por %p104, %p105
      %p107 = scmp.ne.s32.totalorder %s99, %s101
      %p108 = scmp.eq.s32.totalorder %s30, 15
      %p109 = por %p107, %p108
      %p110 = scmp.ne.s32.totalorder %s101, %s102
      %p111 = scmp.eq.s32.totalorder %s30, 0
      %p112 = por %p110, %p111
      %p113 = scmp.ne.s32.totalorder %s101, %s102
      %p114 = scmp.eq.s32.totalorder %s31, 15
      %p115 = por %p113, %p114
      %p117 = scmp.ne.s32.totalorder %s102, %s116
      %p118 = scmp.eq.s32.totalorder %s31, 0
      %p119 = por %p117, %p118
      %s121 = sadd.s32 %s120, 1
      %p124 = scmp.eq.s32.totalorder %s25, 15
      %p125 = scmp.ne.s32.totalorder %s120, %s122
      %p126 = scmp.eq.s32.totalorder %s25, 0
      %p127 = por %p125, %p126
      %p128 = scmp.ne.s32.totalorder %s120, %s122
      %p129 = scmp.eq.s32.totalorder %s30, 15
      %p130 = por %p128, %p129
      %p131 = scmp.ne.s32.totalorder %s122, %s123
      %p132 = scmp.eq.s32.totalorder %s30, 0
      %p133 = por %p131, %p132
      %p134 = scmp.ne.s32.totalorder %s122, %s123
      %p135 = scmp.eq.s32.totalorder %s31, 15
      %p136 = por %p134, %p135
      %p138 = scmp.ne.s32.totalorder %s123, %s137
      %p139 = scmp.eq.s32.totalorder %s31, 0
      %p140 = por %p138, %p139
      %s141 = ssub.s32 %s32, %s44
      %p142 = scmp.eq.s32.totalorder %s141, 0
      %s144 = sadd.s32 %s143, 1
      %s145 = scalar_select %p142, %s143, %s144
      %p148 = pneg %p142
      %p149 = scmp.eq.s32.totalorder %s25, 15
      %p150 = por %p148, %p149
      %p151 = scmp.ne.s32.totalorder %s143, %s146
      %p152 = scmp.eq.s32.totalorder %s25, 0
      %p153 = por %p151, %p152
      %p154 = scmp.ne.s32.totalorder %s143, %s146
      %p155 = scmp.eq.s32.totalorder %s30, 15
      %p156 = por %p154, %p155
      %p157 = scmp.ne.s32.totalorder %s146, %s147
      %p158 = scmp.eq.s32.totalorder %s30, 0
      %p159 = por %p157, %p158
      %p160 = scmp.ne.s32.totalorder %s146, %s147
      %p161 = scmp.eq.s32.totalorder %s31, 15
      %p162 = por %p160, %p161
      %p164 = scmp.ne.s32.totalorder %s147, %s163
      %p165 = scmp.eq.s32.totalorder %s31, 0
      %p166 = por %p164, %p165
      %s167 = ssub.s32 %s32, %s44
      %p168 = scmp.eq.s32.totalorder %s167, 0
      %s170 = sadd.s32 %s169, 1
      %s171 = scalar_select %p168, %s169, %s170
      %p174 = pneg %p168
      %p175 = scmp.eq.s32.totalorder %s25, 15
      %p176 = por %p174, %p175
      %p177 = scmp.ne.s32.totalorder %s169, %s172
      %p178 = scmp.eq.s32.totalorder %s25, 0
      %p179 = por %p177, %p178
      %p180 = scmp.ne.s32.totalorder %s169, %s172
      %p181 = scmp.eq.s32.totalorder %s30, 15
      %p182 = por %p180, %p181
      %p183 = scmp.ne.s32.totalorder %s172, %s173
      %p184 = scmp.eq.s32.totalorder %s30, 0
      %p185 = por %p183, %p184
      %p186 = scmp.ne.s32.totalorder %s172, %s173
      %p187 = scmp.eq.s32.totalorder %s31, 15
      %p188 = por %p186, %p187
      %p190 = scmp.ne.s32.totalorder %s173, %s189
      %p191 = scmp.eq.s32.totalorder %s31, 0
      %p192 = por %p190, %p191
      %p193 = scmp.le.s32.totalorder 1, %s25
      %p194 = scmp.lt.s32.totalorder %s25, 17
      %p195 = pnand %p193, %p194
      %p196 = pneg %p195
      // Predicated region
      $region9: #{tpu_custom_call.1} parent=5 // pred_check
        _
      $region10: #{tpu_custom_call.1} parent=5 // pred_check_branch
        %198 = sbr.rel (%p195) target = $region12
      $region11: #{tpu_custom_call.1} parent=5 // pred_region
        %s199 = ssub.s32 %s25, 1
        // Predicated region
        $region13: #{tpu_custom_call.1} parent=11 // pred_check
          %p200 = pneg %p112
        $region14: #{tpu_custom_call.1} parent=11 // pred_check_branch
          %202 = sbr.rel (%p200) target = $region16
        $region15: #{tpu_custom_call.1} parent=11 // pred_region
          %s204 = ssub.s32 4096, 4096
          %205 = vsyncadd [#allocation11], %s204
          %s206 = sshll.u32 [#allocation12], 4
          %s207 = int_to_ptr.vmem [resolvable:$true] %s206
          %212 = dma.hbm_to_vmem [thread:$0]  %s2, 4096, %s207, [#allocation11], 256, 256, 16
        $region16: #{tpu_custom_call.1} parent=11 // pred_fallthru
          _
        // Predicated region
        $region17: #{tpu_custom_call.1} parent=11 // pred_check
          %p213 = pneg %p133
        $region18: #{tpu_custom_call.1} parent=11 // pred_check_branch
          %215 = sbr.rel (%p213) target = $region20
        $region19: #{tpu_custom_call.1} parent=11 // pred_region
          %s217 = ssub.s32 2048, 2048
          %218 = vsyncadd [#allocation14], %s217
          %s219 = sshll.u32 [#allocation13], 4
          %s220 = int_to_ptr.vmem [resolvable:$true] %s219
          %225 = dma.hbm_to_vmem [thread:$0]  %s3, 2048, %s220, [#allocation14], 128, 128, 8
        $region20: #{tpu_custom_call.1} parent=11 // pred_fallthru
          _
      $region12: #{tpu_custom_call.1} parent=5 // pred_fallthru
        _
      %p226 = scmp.lt.s32.totalorder %s25, 16
      // Predicated region
      $region21: #{tpu_custom_call.1} parent=5 // pred_check
        %p227 = pneg %p226
      $region22: #{tpu_custom_call.1} parent=5 // pred_check_branch
        %229 = sbr.rel (%p227) target = $region24
      $region23: #{tpu_custom_call.1} parent=5 // pred_region
        // Predicated region
        $region25: #{tpu_custom_call.1} parent=23 // pred_check
          %p230 = pneg %p57
        $region26: #{tpu_custom_call.1} parent=23 // pred_check_branch
          %232 = sbr.rel (%p230) target = $region28
        $region27: #{tpu_custom_call.1} parent=23 // pred_region
          %s233 = sand.u32 %s47, 1
          %s234 = scalar_lea.sflag [#allocation8], %s233
          %s235 = sand.u32 %s47, 1
          %s236 = scalar_lea.vmem [#allocation7], %s235
          %s238 = ssub.s32 16, 16
          %239 = vsyncadd %s234, %s238
          %s240 = smul.addr %s32, 16
          %s241 = scalar_lea.hbm %s0, %s240
          %s243 = sshll.u32 %s236, 4
          %s244 = int_to_ptr.vmem [resolvable:$true] %s243
          %246 = dma.hbm_to_vmem [thread:$0]  %s241, 16, %s244, %s234
        $region28: #{tpu_custom_call.1} parent=23 // pred_fallthru
          _
        // Predicated region
        $region29: #{tpu_custom_call.1} parent=23 // pred_check
          %p247 = pneg %p85
        $region30: #{tpu_custom_call.1} parent=23 // pred_check_branch
          %249 = sbr.rel (%p247) target = $region32
        $region31: #{tpu_custom_call.1} parent=23 // pred_region
          %s250 = sand.u32 %s25, 1
          %s251 = scalar_lea.sflag [#allocation11], %s250
          %s252 = sand.u32 %s75, 1
          %s253 = smul.addr %s252, 256
          %s254 = scalar_lea.vmem [#allocation10], %s253
          %s255 = smul.u32 32, %s33
          %s257 = ssub.s32 4096, 4096
          %258 = vsyncadd %s251, %s257
          %s259 = smul.addr %s255, 8
          %s260 = sadd.s32 %s32, %s259
          %s261 = smul.addr %s260, 128
          %s262 = scalar_lea.hbm %s1, %s261
          %s263 = sshll.u32 %s254, 4
          %s264 = int_to_ptr.vmem [resolvable:$true] %s263
          %269 = dma.hbm_to_vmem [thread:$0]  %s262, 4096, %s264, %s251, 1024, 128, 8
        $region32: #{tpu_custom_call.1} parent=23 // pred_fallthru
          _
      $region24: #{tpu_custom_call.1} parent=5 // pred_fallthru
        _
      %p270 = scmp.le.s32.totalorder 1, %s25
      %p271 = scmp.lt.s32.totalorder %s25, 17
      %p272 = pnand %p270, %p271
      %p273 = pneg %p272
      // Predicated region
      $region33: #{tpu_custom_call.1} parent=5 // pred_check
        _
      $region34: #{tpu_custom_call.1} parent=5 // pred_check_branch
        %275 = sbr.rel (%p272) target = $region36
      $region35: #{tpu_custom_call.1} parent=5 // pred_region
        %s276 = ssub.s32 %s25, 1
        %s277 = sand.u32 %s50, 1
        %s278 = scalar_lea.sflag [#allocation8], %s277
        %s279 = sand.u32 %s50, 1
        %s280 = scalar_lea.vmem [#allocation7], %s279
        // Predicated region
        $region37: #{tpu_custom_call.1} parent=35 // pred_check
          %p281 = pneg %p63
        $region38: #{tpu_custom_call.1} parent=35 // pred_check_branch
          %283 = sbr.rel (%p281) target = $region40
        $region39: #{tpu_custom_call.1} parent=35 // pred_region
          %284 = dma.done %s278, 16
        $region40: #{tpu_custom_call.1} parent=35 // pred_fallthru
          _
        %s285 = sand.u32 %s30, 1
        %s286 = scalar_lea.sflag [#allocation11], %s285
        %s287 = sand.u32 %s78, 1
        %s288 = smul.addr %s287, 256
        %s289 = scalar_lea.vmem [#allocation10], %s288
        // Predicated region
        $region41: #{tpu_custom_call.1} parent=35 // pred_check
          %p290 = pneg %p91
        $region42: #{tpu_custom_call.1} parent=35 // pred_check_branch
          %292 = sbr.rel (%p290) target = $region44
        $region43: #{tpu_custom_call.1} parent=35 // pred_region
          %293 = dma.done %s286, 4096
        $region44: #{tpu_custom_call.1} parent=35 // pred_fallthru
          _
        // Predicated region
        $region45: #{tpu_custom_call.1} parent=35 // pred_check
          %p294 = pneg %p112
        $region46: #{tpu_custom_call.1} parent=35 // pred_check_branch
          %296 = sbr.rel (%p294) target = $region48
        $region47: #{tpu_custom_call.1} parent=35 // pred_region
          %297 = dma.done [#allocation11], 4096
        $region48: #{tpu_custom_call.1} parent=35 // pred_fallthru
          _
        // Predicated region
        $region49: #{tpu_custom_call.1} parent=35 // pred_check
          %p298 = pneg %p133
        $region50: #{tpu_custom_call.1} parent=35 // pred_check_branch
          %300 = sbr.rel (%p298) target = $region52
        $region51: #{tpu_custom_call.1} parent=35 // pred_region
          %301 = dma.done [#allocation14], 2048
        $region52: #{tpu_custom_call.1} parent=35 // pred_fallthru
          _
        %s302 = sand.u32 %s50, 1
        %s303 = scalar_lea.sflag [#allocation8], %s302
        %s304 = sand.u32 %s50, 1
        %s305 = scalar_lea.vmem [#allocation7], %s304
        %p306 = pneg %p63
        %p307 = pneg %p60
        %s308 = sand.u32 %s30, 1
        %s309 = scalar_lea.sflag [#allocation11], %s308
        %s310 = sand.u32 %s78, 1
        %s311 = smul.addr %s310, 256
        %s312 = scalar_lea.vmem [#allocation10], %s311
        %p313 = pneg %p91
        %p314 = pneg %p88
        %p315 = pneg %p112
        %p316 = pneg %p109
        %p317 = pneg %p133
        %p318 = pneg %p130
        %p319 = pneg %p159
        %p320 = pneg %p156
        %s321 = sand.u32 %s146, 1
        %s322 = scalar_lea.sflag [#allocation9], %s321
        %s323 = sand.u32 %s146, 1
        %s324 = scalar_lea.vmem [#allocation15], %s323
        %p325 = pneg %p185
        %p326 = pneg %p182
        %s327 = sand.u32 %s172, 1
        %s328 = scalar_lea.sflag [#allocation17], %s327
        %s329 = sand.u32 %s172, 1
        %s330 = smul.addr %s329, 4
        %s331 = scalar_lea.vmem [#allocation16], %s330
        %s332 = smul.u32 32, %s35
        %p333 = scmp.eq.s32.totalorder %s35, 0
        // Predicated region
        $region53: #{tpu_custom_call.1} parent=35 // pred_check
          %p334 = pneg %p333
        $region54: #{tpu_custom_call.1} parent=35 // pred_check_branch
          %336 = sbr.rel (%p334) target = $region56
        $region55: #{tpu_custom_call.1} parent=35 // pred_region
          %v337 = vld [vmem:[%s280] sm:$0x1]
          %v338 = vld [vmem:[#allocation12] sm:$0xff]
          %v339 = vld [vmem:[#allocation12 + $0x8] sm:$0xff]
          %v340 = vld [vmem:[#allocation12 + $0x10] sm:$0xff]
          %v341 = vld [vmem:[#allocation12 + $0x18] sm:$0xff]
          %v342 = vld [vmem:[#allocation12 + $0x20] sm:$0xff]
          %v343 = vld [vmem:[#allocation12 + $0x28] sm:$0xff]
          %v344 = vld [vmem:[#allocation12 + $0x30] sm:$0xff]
          %v345 = vld [vmem:[#allocation12 + $0x38] sm:$0xff]
          %v346 = vld [vmem:[#allocation12 + $0x40] sm:$0xff]
          %v347 = vld [vmem:[#allocation12 + $0x48] sm:$0xff]
          %v348 = vld [vmem:[#allocation12 + $0x50] sm:$0xff]
          %v349 = vld [vmem:[#allocation12 + $0x58] sm:$0xff]
          %v350 = vld [vmem:[#allocation12 + $0x60] sm:$0xff]
          %v351 = vld [vmem:[#allocation12 + $0x68] sm:$0xff]
          %v352 = vld [vmem:[#allocation12 + $0x70] sm:$0xff]
          %v353 = vld [vmem:[#allocation12 + $0x78] sm:$0xff]
          %v354 = vld [vmem:[#allocation12 + $0x80] sm:$0xff]
          %v355 = vld [vmem:[#allocation12 + $0x88] sm:$0xff]
          %v356 = vld [vmem:[#allocation12 + $0x90] sm:$0xff]
          %v357 = vld [vmem:[#allocation12 + $0x98] sm:$0xff]
          %v358 = vld [vmem:[#allocation12 + $0xa0] sm:$0xff]
          %v359 = vld [vmem:[#allocation12 + $0xa8] sm:$0xff]
          %v360 = vld [vmem:[#allocation12 + $0xb0] sm:$0xff]
          %v361 = vld [vmem:[#allocation12 + $0xb8] sm:$0xff]
          %v362 = vld [vmem:[#allocation12 + $0xc0] sm:$0xff]
          %v363 = vld [vmem:[#allocation12 + $0xc8] sm:$0xff]
          %v364 = vld [vmem:[#allocation12 + $0xd0] sm:$0xff]
          %v365 = vld [vmem:[#allocation12 + $0xd8] sm:$0xff]
          %v366 = vld [vmem:[#allocation12 + $0xe0] sm:$0xff]
          %v367 = vld [vmem:[#allocation12 + $0xe8] sm:$0xff]
          %v368 = vld [vmem:[#allocation12 + $0xf0] sm:$0xff]
          %v369 = vld [vmem:[#allocation12 + $0xf8] sm:$0xff]
          %370 = vmatprep.subr.mxu0 %v339
          %371 = vmatpush1.msra.mxu0 %v338
          %372 = vmatprep.subr.mxu0 %v341
          %373 = vmatpush1.msra.mxu0 %v340
          %374 = vmatprep.subr.mxu0 %v343
          %375 = vmatpush1.msra.mxu0 %v342
          %376 = vmatprep.subr.mxu0 %v345
          %377 = vmatpush1.msra.mxu0 %v344
          %378 = vmatprep.subr.mxu0 %v347
          %379 = vmatpush1.msra.mxu0 %v346
          %380 = vmatprep.subr.mxu0 %v349
          %381 = vmatpush1.msra.mxu0 %v348
          %382 = vmatprep.subr.mxu0 %v351
          %383 = vmatpush1.msra.mxu0 %v350
          %384 = vmatprep.subr.mxu0 %v353
          %385 = vmatpush1.msra.mxu0 %v352
          %386 = vmatprep.subr.mxu0 %v355
          %387 = vmatpush1.msra.mxu0 %v354
          %388 = vmatprep.subr.mxu0 %v357
          %389 = vmatpush1.msra.mxu0 %v356
          %390 = vmatprep.subr.mxu0 %v359
          %391 = vmatpush1.msra.mxu0 %v358
          %392 = vmatprep.subr.mxu0 %v361
          %393 = vmatpush1.msra.mxu0 %v360
          %394 = vmatprep.subr.mxu0 %v363
          %395 = vmatpush1.msra.mxu0 %v362
          %396 = vmatprep.subr.mxu0 %v365
          %397 = vmatpush1.msra.mxu0 %v364
          %398 = vmatprep.subr.mxu0 %v367
          %399 = vmatpush1.msra.mxu0 %v366
          %400 = vmatprep.subr.mxu0 %v369
          %401 = vmatpush1.msra.mxu0 %v368
          %402 = vmatprep.subr.mxu0 0.0
          %403 = vmatpush1.msra.mxu0 0.0
          %404 = vmatprep.subr.mxu0 0.0
          %405 = vmatpush1.msra.mxu0 0.0
          %406 = vmatprep.subr.mxu0 0.0
          %407 = vmatpush1.msra.mxu0 0.0
          %408 = vmatprep.subr.mxu0 0.0
          %409 = vmatpush1.msra.mxu0 0.0
          %410 = vmatprep.subr.mxu0 0.0
          %411 = vmatpush1.msra.mxu0 0.0
          %412 = vmatprep.subr.mxu0 0.0
          %413 = vmatpush1.msra.mxu0 0.0
          %414 = vmatprep.subr.mxu0 0.0
          %415 = vmatpush1.msra.mxu0 0.0
          %416 = vmatprep.subr.mxu0 0.0
          %417 = vmatpush1.msra.mxu0 0.0
          %418 = vmatprep.subr.mxu0 0.0
          %419 = vmatpush1.msra.mxu0 0.0
          %420 = vmatprep.subr.mxu0 0.0
          %421 = vmatpush1.msra.mxu0 0.0
          %422 = vmatprep.subr.mxu0 0.0
          %423 = vmatpush1.msra.mxu0 0.0
          %424 = vmatprep.subr.mxu0 0.0
          %425 = vmatpush1.msra.mxu0 0.0
          %426 = vmatprep.subr.mxu0 0.0
          %427 = vmatpush1.msra.mxu0 0.0
          %428 = vmatprep.subr.mxu0 0.0
          %429 = vmatpush1.msra.mxu0 0.0
          %430 = vmatprep.subr.mxu0 0.0
          %431 = vmatpush1.msra.mxu0 0.0
          %432 = vmatprep.subr.mxu0 0.0
          %433 = vmatpush1.msra.mxu0 0.0
          %434 = vmatprep.mubr.f32.mxu0 0.0
          %435 = vmatmul.mubr.f32.gmra.mrb[0].mxu0 %v337
          %v436 = vpop.f32.mrb[0].mxu0
          %v437 = vadd.f32 0.0, %v436
          %v438 = vpop.f32.mrb[0].mxu0
          %v439 = vadd.f32 0.0, %v438
          %440 = vdwg.mxu0
          %441 = vst [vmem:[#allocation2] sm:$0x1] %v437
          %442 = vst [vmem:[#allocation3] sm:$0x1] %v439
          %vm443 = vcmask 0
          %444 = vst.msk [vmem:[#allocation4] sm:$0x1] %vm443, -inf
          %445 = vst.msk [vmem:[#allocation5] sm:$0x1] %vm443, 0.0
          %446 = vst [vmem:[#allocation6] sm:$0x1] 0.0
        $region56: #{tpu_custom_call.1} parent=35 // pred_fallthru
          _
        %v447 = vld [vmem:[%s289] sm:$0xff]
        %v448 = vld [vmem:[%s289 + $0x8] sm:$0xff]
        %v449 = vld [vmem:[%s289 + $0x10] sm:$0xff]
        %v450 = vld [vmem:[%s289 + $0x18] sm:$0xff]
        %v451 = vld [vmem:[%s289 + $0x20] sm:$0xff]
        %v452 = vld [vmem:[%s289 + $0x28] sm:$0xff]
        %v453 = vld [vmem:[%s289 + $0x30] sm:$0xff]
        %v454 = vld [vmem:[%s289 + $0x38] sm:$0xff]
        %v455 = vld [vmem:[%s289 + $0x40] sm:$0xff]
        %v456 = vld [vmem:[%s289 + $0x48] sm:$0xff]
        %v457 = vld [vmem:[%s289 + $0x50] sm:$0xff]
        %v458 = vld [vmem:[%s289 + $0x58] sm:$0xff]
        %v459 = vld [vmem:[%s289 + $0x60] sm:$0xff]
        %v460 = vld [vmem:[%s289 + $0x68] sm:$0xff]
        %v461 = vld [vmem:[%s289 + $0x70] sm:$0xff]
        %v462 = vld [vmem:[%s289 + $0x78] sm:$0xff]
        %v463 = vld [vmem:[%s289 + $0x80] sm:$0xff]
        %v464 = vld [vmem:[%s289 + $0x88] sm:$0xff]
        %v465 = vld [vmem:[%s289 + $0x90] sm:$0xff]
        %v466 = vld [vmem:[%s289 + $0x98] sm:$0xff]
        %v467 = vld [vmem:[%s289 + $0xa0] sm:$0xff]
        %v468 = vld [vmem:[%s289 + $0xa8] sm:$0xff]
        %v469 = vld [vmem:[%s289 + $0xb0] sm:$0xff]
        %v470 = vld [vmem:[%s289 + $0xb8] sm:$0xff]
        %v471 = vld [vmem:[%s289 + $0xc0] sm:$0xff]
        %v472 = vld [vmem:[%s289 + $0xc8] sm:$0xff]
        %v473 = vld [vmem:[%s289 + $0xd0] sm:$0xff]
        %v474 = vld [vmem:[%s289 + $0xd8] sm:$0xff]
        %v475 = vld [vmem:[%s289 + $0xe0] sm:$0xff]
        %v476 = vld [vmem:[%s289 + $0xe8] sm:$0xff]
        %v477 = vld [vmem:[%s289 + $0xf0] sm:$0xff]
        %v478 = vld [vmem:[%s289 + $0xf8] sm:$0xff]
        %v479 = vld [vmem:[#allocation2] sm:$0x1]
        %480 = vmatprep.subr.mxu0 0.0
        %481 = vmatpush1.xpose.msra.mxu0 %v447
        %482 = vmatprep.subr.mxu0 0.0
        %483 = vmatpush1.xpose.msra.mxu0 %v448
        %484 = vmatprep.subr.mxu0 0.0
        %485 = vmatpush1.xpose.msra.mxu0 %v449
        %486 = vmatprep.subr.mxu0 0.0
        %487 = vmatpush1.xpose.msra.mxu0 %v450
        %488 = vmatprep.subr.mxu0 0.0
        %489 = vmatpush1.xpose.msra.mxu0 %v451
        %490 = vmatprep.subr.mxu0 0.0
        %491 = vmatpush1.xpose.msra.mxu0 %v452
        %492 = vmatprep.subr.mxu0 0.0
        %493 = vmatpush1.xpose.msra.mxu0 %v453
        %494 = vmatprep.subr.mxu0 0.0
        %495 = vmatpush1.xpose.msra.mxu0 %v454
        %496 = vmatprep.subr.mxu0 0.0
        %497 = vmatpush1.xpose.msra.mxu0 %v455
        %498 = vmatprep.subr.mxu0 0.0
        %499 = vmatpush1.xpose.msra.mxu0 %v456
        %500 = vmatprep.subr.mxu0 0.0
        %501 = vmatpush1.xpose.msra.mxu0 %v457
        %502 = vmatprep.subr.mxu0 0.0
        %503 = vmatpush1.xpose.msra.mxu0 %v458
        %504 = vmatprep.subr.mxu0 0.0
        %505 = vmatpush1.xpose.msra.mxu0 %v459
        %506 = vmatprep.subr.mxu0 0.0
        %507 = vmatpush1.xpose.msra.mxu0 %v460
        %508 = vmatprep.subr.mxu0 0.0
        %509 = vmatpush1.xpose.msra.mxu0 %v461
        %510 = vmatprep.subr.mxu0 0.0
        %511 = vmatpush1.xpose.msra.mxu0 %v462
        %512 = vmatprep.subr.mxu0 0.0
        %513 = vmatpush1.xpose.msra.mxu0 %v463
        %514 = vmatprep.subr.mxu0 0.0
        %515 = vmatpush1.xpose.msra.mxu0 %v464
        %516 = vmatprep.subr.mxu0 0.0
        %517 = vmatpush1.xpose.msra.mxu0 %v465
        %518 = vmatprep.subr.mxu0 0.0
        %519 = vmatpush1.xpose.msra.mxu0 %v466
        %520 = vmatprep.subr.mxu0 0.0
        %521 = vmatpush1.xpose.msra.mxu0 %v467
        %522 = vmatprep.subr.mxu0 0.0
        %523 = vmatpush1.xpose.msra.mxu0 %v468
        %524 = vmatprep.subr.mxu0 0.0
        %525 = vmatpush1.xpose.msra.mxu0 %v469
        %526 = vmatprep.subr.mxu0 0.0
        %527 = vmatpush1.xpose.msra.mxu0 %v470
        %528 = vmatprep.subr.mxu0 0.0
        %529 = vmatpush1.xpose.msra.mxu0 %v471
        %530 = vmatprep.subr.mxu0 0.0
        %531 = vmatpush1.xpose.msra.mxu0 %v472
        %532 = vmatprep.subr.mxu0 0.0
        %533 = vmatpush1.xpose.msra.mxu0 %v473
        %534 = vmatprep.subr.mxu0 0.0
        %535 = vmatpush1.xpose.msra.mxu0 %v474
        %536 = vmatprep.subr.mxu0 0.0
        %537 = vmatpush1.xpose.msra.mxu0 %v475
        %538 = vmatprep.subr.mxu0 0.0
        %539 = vmatpush1.xpose.msra.mxu0 %v476
        %540 = vmatprep.subr.mxu0 0.0
        %541 = vmatpush1.xpose.msra.mxu0 %v477
        %542 = vmatprep.subr.mxu0 0.0
        %543 = vmatpush1.xpose.msra.mxu0 %v478
        %544 = vmatprep.mubr.f32.mxu0 0.0
        %545 = vmatmul.mubr.f32.gmra.mrb[0].mxu0 %v479
        %v546 = vpop.f32.mrb[0].mxu0
        %v547 = vadd.f32 0.0, %v546
        %v548 = vpop.f32.mrb[0].mxu0
        %v549 = vadd.f32 0.0, %v548
        %550 = vdwg.mxu0
        %s551 = smul.u32 %s35, 256
        %v554 = vcombine.low %v547, %v549
        %v556 = vunpack.c.l.s4 1966171168
        %v557 = vunpack.c.0.s8 %v556
        %v558 = vlaneseq
        %v559 = vshrl.u32 %v558, 7
        %v560 = vsub.s32 %v557, %v559
        %v561 = vrot.slane %v554, %v560
        %v563 = vunpack.c.l.s4 1966171168
        %v564 = vunpack.c.0.s8 %v563
        %v565 = vlaneseq
        %v566 = vshrl.u32 %v565, 7
        %v567 = vsub.s32 %v564, %v566
        %v568 = vrot.slane %v561, %v567
        %s570 = sshra.s32 %s551, 7
        %s571 = sand.u32 %s551, 127
        %s572 = scalar_lea.vmem %s331, %s570 [#allocation16]
        %v573 = vlaneseq
        %vm574 = vcmp.ge.s32.totalorder %v573, 0
        %vm575 = vcmp.lt.s32.totalorder %v573, 256
        %vm576 = vmand %vm574, %vm575
        %577 = vst.msk [vmem:[%s572] sm:$0x3] %vm576, %v568
        %v578 = vld [vmem:[#allocation4] sm:$0x1]
        %vm579 = vcmask 1040384
        %v580 = vsel %vm579, %v547, -inf
        %v581 = vsel %vm579, %v549, -inf
        %v582 = vmax.f32 %v580, %v581
        %583 = vmax.xlane.f32.xlu0 %v582
        %v584 = vpop.xlane.xlu0 %583
        %v585 = vmax.f32 %v578, %v584
        %v586 = vsub.f32 %v578, %v585
        %v587 = vmul.f32 %v586, 1.442695
        %v588 = vpow.pop %v587
        %590 = vset.pattern.permute.xlu0 0
        %591 = vperm.xlu0 %590, %v585
        %v592 = vpop.permute.xlu0 %591
        %v594 = vlaneseq
        %v595 = vshrl.u32 %v594, 7
        %v596 = vsub.s32 0, %v595
        %v597 = vrot.slane %v592, %v596
        %v598 = vsub.f32 %v547, %v597
        %v599 = vsub.f32 %v549, %v597
        %v600 = vmul.f32 %v598, 1.442695
        %v601 = vpow.pop %v600
        %v602 = vmul.f32 %v599, 1.442695
        %v603 = vpow.pop %v602
        %v604 = vld [vmem:[#allocation5] sm:$0x1]
        %v605 = vmul.f32 %v588, %v604
        %v606 = vsel %vm579, %v601, 0.0
        %v607 = vsel %vm579, %v603, 0.0
        %v608 = vadd.f32 %v606, %v607
        %609 = vadd.xlane.f32.xlu0 %v608
        %v610 = vpop.xlane.xlu0 %609
        %v611 = vadd.f32 %v605, %v610
        %vm612 = vcmask 0
        %613 = vst.msk [vmem:[#allocation5] sm:$0x1] %vm612, %v611
        %v614 = vld [vmem:[#allocation6] sm:$0x1]
        %616 = vset.pattern.permute.xlu0 0
        %617 = vperm.xlu0 %616, %v588
        %v618 = vpop.permute.xlu0 %617
        %v620 = vlaneseq
        %v621 = vshrl.u32 %v620, 7
        %v622 = vsub.s32 0, %v621
        %v623 = vrot.slane %v618, %v622
        %v624 = vmul.f32 %v623, %v614
        %625 = vmatprep.subr.mxu0 0.0
        %626 = vmatpush1.msra.mxu0 %v447
        %627 = vmatprep.subr.mxu0 0.0
        %628 = vmatpush1.msra.mxu0 %v448
        %629 = vmatprep.subr.mxu0 0.0
        %630 = vmatpush1.msra.mxu0 %v449
        %631 = vmatprep.subr.mxu0 0.0
        %632 = vmatpush1.msra.mxu0 %v450
        %633 = vmatprep.subr.mxu0 0.0
        %634 = vmatpush1.msra.mxu0 %v451
        %635 = vmatprep.subr.mxu0 0.0
        %636 = vmatpush1.msra.mxu0 %v452
        %637 = vmatprep.subr.mxu0 0.0
        %638 = vmatpush1.msra.mxu0 %v453
        %639 = vmatprep.subr.mxu0 0.0
        %640 = vmatpush1.msra.mxu0 %v454
        %641 = vmatprep.subr.mxu0 0.0
        %642 = vmatpush1.msra.mxu0 %v455
        %643 = vmatprep.subr.mxu0 0.0
        %644 = vmatpush1.msra.mxu0 %v456
        %645 = vmatprep.subr.mxu0 0.0
        %646 = vmatpush1.msra.mxu0 %v457
        %647 = vmatprep.subr.mxu0 0.0
        %648 = vmatpush1.msra.mxu0 %v458
        %649 = vmatprep.subr.mxu0 0.0
        %650 = vmatpush1.msra.mxu0 %v459
        %651 = vmatprep.subr.mxu0 0.0
        %652 = vmatpush1.msra.mxu0 %v460
        %653 = vmatprep.subr.mxu0 0.0
        %654 = vmatpush1.msra.mxu0 %v461
        %655 = vmatprep.subr.mxu0 0.0
        %656 = vmatpush1.msra.mxu0 %v462
        %657 = vmatprep.subr.mxu0 0.0
        %658 = vmatpush1.msra.mxu0 %v463
        %659 = vmatprep.subr.mxu0 0.0
        %660 = vmatpush1.msra.mxu0 %v464
        %661 = vmatprep.subr.mxu0 0.0
        %662 = vmatpush1.msra.mxu0 %v465
        %663 = vmatprep.subr.mxu0 0.0
        %664 = vmatpush1.msra.mxu0 %v466
        %665 = vmatprep.subr.mxu0 0.0
        %666 = vmatpush1.msra.mxu0 %v467
        %667 = vmatprep.subr.mxu0 0.0
        %668 = vmatpush1.msra.mxu0 %v468
        %669 = vmatprep.subr.mxu0 0.0
        %670 = vmatpush1.msra.mxu0 %v469
        %671 = vmatprep.subr.mxu0 0.0
        %672 = vmatpush1.msra.mxu0 %v470
        %673 = vmatprep.subr.mxu0 0.0
        %674 = vmatpush1.msra.mxu0 %v471
        %675 = vmatprep.subr.mxu0 0.0
        %676 = vmatpush1.msra.mxu0 %v472
        %677 = vmatprep.subr.mxu0 0.0
        %678 = vmatpush1.msra.mxu0 %v473
        %679 = vmatprep.subr.mxu0 0.0
        %680 = vmatpush1.msra.mxu0 %v474
        %681 = vmatprep.subr.mxu0 0.0
        %682 = vmatpush1.msra.mxu0 %v475
        %683 = vmatprep.subr.mxu0 0.0
        %684 = vmatpush1.msra.mxu0 %v476
        %685 = vmatprep.subr.mxu0 0.0
        %686 = vmatpush1.msra.mxu0 %v477
        %687 = vmatprep.subr.mxu0 0.0
        %688 = vmatpush1.msra.mxu0 %v478
        %689 = vmatprep.mubr.f32.mxu0 %v603
        %690 = vmatmul.mubr.f32.gmra.mrb[0].mxu0 %v601
        %v691 = vpop.f32.mrb[0].mxu0
        %v692 = vadd.f32 0.0, %v691
        %v693 = vpop.f32.mrb[0].mxu0
        %694 = vdwg.mxu0
        %v695 = vadd.f32 %v624, %v692
        %696 = vst [vmem:[#allocation6] sm:$0x1] %v695
        %697 = vst.msk [vmem:[#allocation4] sm:$0x1] %vm612, %v585
        %p698 = scmp.eq.s32.totalorder %s35, 1
        // Predicated region
        $region57: #{tpu_custom_call.1} parent=35 // pred_check
          %p699 = pneg %p698
        $region58: #{tpu_custom_call.1} parent=35 // pred_check_branch
          %701 = sbr.rel (%p699) target = $region60
        $region59: #{tpu_custom_call.1} parent=35 // pred_region
          %v702 = vld [vmem:[#allocation5] sm:$0x1]
          %v703 = vrcp.pop %v702
          %v704 = vmul.f32 1.0, %v703
          %v705 = vld [vmem:[%s331] sm:$0xf]
          %v706 = vld [vmem:[#allocation4] sm:$0x1]
          %708 = vset.pattern.permute.xlu0 0
          %709 = vperm.xlu0 %708, %v706
          %v710 = vpop.permute.xlu0 %709
          %v712 = vlaneseq
          %v713 = vshrl.u32 %v712, 7
          %v714 = vsub.s32 0, %v713
          %v715 = vrot.slane %v710, %v714
          %v716 = vsub.f32 %v705, %v715
          %v717 = vmul.f32 %v716, 1.442695
          %v718 = vpow.pop %v717
          %720 = vset.pattern.permute.xlu0 0
          %721 = vperm.xlu0 %720, %v704
          %v722 = vpop.permute.xlu0 %721
          %v724 = vlaneseq
          %v725 = vshrl.u32 %v724, 7
          %v726 = vsub.s32 0, %v725
          %v727 = vrot.slane %v722, %v726
          %v728 = vmul.f32 %v718, %v727
          %vm729 = vcmp.lt.s32.totalorder %v573, 512
          %vm730 = vmand %vm574, %vm729
          %731 = vst.msk [vmem:[%s331] sm:$0xf] %vm730, %v728
          %v732 = vld [vmem:[#allocation6] sm:$0x1]
          %v733 = vmul.f32 %v732, %v727
          %v734 = vld [vmem:[#allocation13] sm:$0xff]
          %v735 = vld [vmem:[#allocation13 + $0x8] sm:$0xff]
          %v736 = vld [vmem:[#allocation13 + $0x10] sm:$0xff]
          %v737 = vld [vmem:[#allocation13 + $0x18] sm:$0xff]
          %v738 = vld [vmem:[#allocation13 + $0x20] sm:$0xff]
          %v739 = vld [vmem:[#allocation13 + $0x28] sm:$0xff]
          %v740 = vld [vmem:[#allocation13 + $0x30] sm:$0xff]
          %v741 = vld [vmem:[#allocation13 + $0x38] sm:$0xff]
          %v742 = vld [vmem:[#allocation13 + $0x40] sm:$0xff]
          %v743 = vld [vmem:[#allocation13 + $0x48] sm:$0xff]
          %v744 = vld [vmem:[#allocation13 + $0x50] sm:$0xff]
          %v745 = vld [vmem:[#allocation13 + $0x58] sm:$0xff]
          %v746 = vld [vmem:[#allocation13 + $0x60] sm:$0xff]
          %v747 = vld [vmem:[#allocation13 + $0x68] sm:$0xff]
          %v748 = vld [vmem:[#allocation13 + $0x70] sm:$0xff]
          %v749 = vld [vmem:[#allocation13 + $0x78] sm:$0xff]
          %v750 = vld [vmem:[#allocation3] sm:$0x1]
          %751 = vmatprep.subr.mxu0 0.0
          %752 = vmatpush1.msra.mxu0 %v734
          %753 = vmatprep.subr.mxu0 0.0
          %754 = vmatpush1.msra.mxu0 %v735
          %755 = vmatprep.subr.mxu0 0.0
          %756 = vmatpush1.msra.mxu0 %v736
          %757 = vmatprep.subr.mxu0 0.0
          %758 = vmatpush1.msra.mxu0 %v737
          %759 = vmatprep.subr.mxu0 0.0
          %760 = vmatpush1.msra.mxu0 %v738
          %761 = vmatprep.subr.mxu0 0.0
          %762 = vmatpush1.msra.mxu0 %v739
          %763 = vmatprep.subr.mxu0 0.0
          %764 = vmatpush1.msra.mxu0 %v740
          %765 = vmatprep.subr.mxu0 0.0
          %766 = vmatpush1.msra.mxu0 %v741
          %767 = vmatprep.subr.mxu0 0.0
          %768 = vmatpush1.msra.mxu0 %v742
          %769 = vmatprep.subr.mxu0 0.0
          %770 = vmatpush1.msra.mxu0 %v743
          %771 = vmatprep.subr.mxu0 0.0
          %772 = vmatpush1.msra.mxu0 %v744
          %773 = vmatprep.subr.mxu0 0.0
          %774 = vmatpush1.msra.mxu0 %v745
          %775 = vmatprep.subr.mxu0 0.0
          %776 = vmatpush1.msra.mxu0 %v746
          %777 = vmatprep.subr.mxu0 0.0
          %778 = vmatpush1.msra.mxu0 %v747
          %779 = vmatprep.subr.mxu0 0.0
          %780 = vmatpush1.msra.mxu0 %v748
          %781 = vmatprep.subr.mxu0 0.0
          %782 = vmatpush1.msra.mxu0 %v749
          %783 = vmatprep.subr.mxu0 0.0
          %784 = vmatpush1.msra.mxu0 0.0
          %785 = vmatprep.subr.mxu0 0.0
          %786 = vmatpush1.msra.mxu0 0.0
          %787 = vmatprep.subr.mxu0 0.0
          %788 = vmatpush1.msra.mxu0 0.0
          %789 = vmatprep.subr.mxu0 0.0
          %790 = vmatpush1.msra.mxu0 0.0
          %791 = vmatprep.subr.mxu0 0.0
          %792 = vmatpush1.msra.mxu0 0.0
          %793 = vmatprep.subr.mxu0 0.0
          %794 = vmatpush1.msra.mxu0 0.0
          %795 = vmatprep.subr.mxu0 0.0
          %796 = vmatpush1.msra.mxu0 0.0
          %797 = vmatprep.subr.mxu0 0.0
          %798 = vmatpush1.msra.mxu0 0.0
          %799 = vmatprep.subr.mxu0 0.0
          %800 = vmatpush1.msra.mxu0 0.0
          %801 = vmatprep.subr.mxu0 0.0
          %802 = vmatpush1.msra.mxu0 0.0
          %803 = vmatprep.subr.mxu0 0.0
          %804 = vmatpush1.msra.mxu0 0.0
          %805 = vmatprep.subr.mxu0 0.0
          %806 = vmatpush1.msra.mxu0 0.0
          %807 = vmatprep.subr.mxu0 0.0
          %808 = vmatpush1.msra.mxu0 0.0
          %809 = vmatprep.subr.mxu0 0.0
          %810 = vmatpush1.msra.mxu0 0.0
          %811 = vmatprep.subr.mxu0 0.0
          %812 = vmatpush1.msra.mxu0 0.0
          %813 = vmatprep.subr.mxu0 0.0
          %814 = vmatpush1.msra.mxu0 0.0
          %815 = vmatprep.mubr.f32.mxu0 0.0
          %816 = vmatmul.mubr.f32.gmra.mrb[0].mxu0 %v733
          %v817 = vpop.f32.mrb[0].mxu0
          %v818 = vadd.f32 %v750, %v817
          %v819 = vpop.f32.mrb[0].mxu0
          %820 = vdwg.mxu0
          %v821 = vtanh.pop %v818
          %822 = vst [vmem:[%s324] sm:$0x1] %v821
        $region60: #{tpu_custom_call.1} parent=35 // pred_fallthru
          _
        %s823 = sand.u32 %s146, 1
        %s824 = scalar_lea.sflag [#allocation9], %s823
        %s825 = sand.u32 %s146, 1
        %s826 = scalar_lea.vmem [#allocation15], %s825
        %s827 = sand.u32 %s172, 1
        %s828 = scalar_lea.sflag [#allocation17], %s827
        %s829 = sand.u32 %s172, 1
        %s830 = smul.addr %s829, 4
        %s831 = scalar_lea.vmem [#allocation16], %s830
        // Predicated region
        $region61: #{tpu_custom_call.1} parent=35 // pred_check
          %p832 = pneg %p156
        $region62: #{tpu_custom_call.1} parent=35 // pred_check_branch
          %834 = sbr.rel (%p832) target = $region64
        $region63: #{tpu_custom_call.1} parent=35 // pred_region
          %s836 = ssub.s32 16, 16
          %837 = vsyncadd %s824, %s836
          %s838 = smul.addr %s34, 16
          %s839 = scalar_lea.hbm %s4, %s838
          %s841 = sshll.u32 %s826, 4
          %s842 = int_to_ptr.vmem [resolvable:$true] %s841
          %844 = dma.vmem_to_hbm [thread:$0]  %s842, 16, %s839, %s824
        $region64: #{tpu_custom_call.1} parent=35 // pred_fallthru
          _
        // Predicated region
        $region65: #{tpu_custom_call.1} parent=35 // pred_check
          %p845 = pneg %p182
        $region66: #{tpu_custom_call.1} parent=35 // pred_check_branch
          %847 = sbr.rel (%p845) target = $region68
        $region67: #{tpu_custom_call.1} parent=35 // pred_region
          %s849 = ssub.s32 64, 64
          %850 = vsyncadd %s828, %s849
          %s851 = smul.addr %s34, 4
          %s852 = smul.addr %s851, 16
          %s853 = scalar_lea.hbm %s5, %s852
          %s855 = sshll.u32 %s831, 4
          %s856 = int_to_ptr.vmem [resolvable:$true] %s855
          %858 = dma.vmem_to_hbm [thread:$0]  %s856, 64, %s853, %s828
        $region68: #{tpu_custom_call.1} parent=35 // pred_fallthru
          _
      $region36: #{tpu_custom_call.1} parent=5 // pred_fallthru
        _
      %p859 = scmp.le.s32.totalorder 2, %s25
      // Predicated region
      $region69: #{tpu_custom_call.1} parent=5 // pred_check
        %p860 = pneg %p859
      $region70: #{tpu_custom_call.1} parent=5 // pred_check_branch
        %862 = sbr.rel (%p860) target = $region72
      $region71: #{tpu_custom_call.1} parent=5 // pred_region
        %s863 = ssub.s32 %s25, 2
        // Predicated region
        $region73: #{tpu_custom_call.1} parent=71 // pred_check
          %p864 = pneg %p162
        $region74: #{tpu_custom_call.1} parent=71 // pred_check_branch
          %866 = sbr.rel (%p864) target = $region76
        $region75: #{tpu_custom_call.1} parent=71 // pred_region
          %s867 = sand.u32 %s147, 1
          %s868 = scalar_lea.sflag [#allocation9], %s867
          %s869 = sand.u32 %s147, 1
          %s870 = scalar_lea.vmem [#allocation15], %s869
          %871 = dma.done %s868, 16
        $region76: #{tpu_custom_call.1} parent=71 // pred_fallthru
          _
        // Predicated region
        $region77: #{tpu_custom_call.1} parent=71 // pred_check
          %p872 = pneg %p188
        $region78: #{tpu_custom_call.1} parent=71 // pred_check_branch
          %874 = sbr.rel (%p872) target = $region80
        $region79: #{tpu_custom_call.1} parent=71 // pred_region
          %s875 = sand.u32 %s173, 1
          %s876 = scalar_lea.sflag [#allocation17], %s875
          %s877 = sand.u32 %s173, 1
          %s878 = smul.addr %s877, 4
          %s879 = scalar_lea.vmem [#allocation16], %s878
          %880 = dma.done %s876, 64
        $region80: #{tpu_custom_call.1} parent=71 // pred_fallthru
          _
      $region72: #{tpu_custom_call.1} parent=5 // pred_fallthru
        _
    $region6: #{tpu_custom_call.1} parent=1 // loop_footer
      %s29 = sadd.s32 1, %s25
    $region7: #{tpu_custom_call.1} parent=1 // loop_footer_branch
      %24 = sbr.rel target = $region3
    $region8: #{tpu_custom_call.1} parent=1 // loop_exit
      _
    %881 = vsyncpa [#allocation8], 1
    %s882 = scalar_lea.sflag [#allocation8], 1
    %883 = vsyncpa %s882, 1
    %884 = vsyncpa [#allocation11], 1
    %s885 = scalar_lea.sflag [#allocation11], 1
    %886 = vsyncpa %s885, 1
    %887 = vsyncpa [#allocation14], 1
    %888 = vsyncpa [#allocation9], 1
    %s889 = scalar_lea.sflag [#allocation9], 1
    %890 = vsyncpa %s889, 1
    %891 = vsyncpa [#allocation17], 1
    %s892 = scalar_lea.sflag [#allocation17], 1
    %893 = vsyncpa %s892, 1

</llo_original>
